<compile_context>
chip_gen: v7x
topology: tpu7x:2x2x1
jax: 0.10.0
libtpu: 0.0.40
codegen_flags: <defaults>
</compile_context>

<pallas_src>
import jax
import jax.numpy as jnp
from jax.experimental import pallas as pl
from jax.experimental.pallas import tpu as pltpu


def _round_up(x, m):
    return ((x + m - 1) // m) * m


def _pick_tile(n, candidates, max_overhead=0.07):
    """Largest candidate tile whose zero-padding overhead on `n` is <= max_overhead."""
    for t in candidates:
        if (_round_up(n, t) - n) <= max_overhead * n:
            return t
    return candidates[-1]


def _sage_encoder_kernel(a_ref, xk_ref, xi_ref, inv_deg_ref, wl_ref, wr_ref, b_ref,
                         out_ref, acc_ref):
    """Grid = (row tiles i, contraction tiles k).

    a_ref      [tm, tk] int8   unnormalized edge counts (dst rows, src cols)
    xk_ref     [tk, F]  mm_dt  node features, contraction block
    xi_ref     [tm, F]  f32    node features, row block (root term)
    inv_deg_ref[tm, 1]  f32    1 / max(in_degree, 1)
    wl_ref     [F, 2C]  f32    neighbor weights, columns = [mu | logstd]
    wr_ref     [F, 2C]  f32    root weights,     columns = [mu | logstd]
    b_ref      [1, 2C]  f32    fused bias
    out_ref    [tm, 2C] f32
    acc_ref    [tm, F]  f32    scratch: running sum_j counts[i,j] * x_j
    """
    k = pl.program_id(1)

    @pl.when(k == 0)
    def _():
        acc_ref[...] = jnp.zeros_like(acc_ref)

    # Neighbor-sum partial product: acc += counts[i_blk, k_blk] @ x[k_blk]
    # (int8 counts upcast in-vreg -> exact; accumulation stays f32.)
    mm_dt = xk_ref.dtype
    acc_ref[...] += jnp.dot(a_ref[...].astype(mm_dt), xk_ref[...],
                            preferred_element_type=jnp.float32)

    @pl.when(k == pl.num_programs(1) - 1)
    def _():
        # Mean aggregation (row scale) + fused linear layers, all-f32 epilogue.
        agg = acc_ref[...] * inv_deg_ref[...]                         # [tm, F]
        out = (jnp.dot(agg, wl_ref[...], preferred_element_type=jnp.float32)
               + jnp.dot(xi_ref[...], wr_ref[...], preferred_element_type=jnp.float32)
               + b_ref[...])
        out_ref[...] = out.astype(out_ref.dtype)


def build_adj_counts(edge_index, num_nodes):
    """Dense unnormalized adjacency counts (int8) and f32 inverse in-degree [N, 1]."""
    src = edge_index[0]
    dst = edge_index[1]
    counts32 = jnp.zeros((num_nodes, num_nodes), jnp.int32).at[dst, src].add(1)
    deg = jnp.sum(counts32, axis=1, keepdims=True)
    inv_deg = 1.0 / jnp.maximum(deg, 1).astype(jnp.float32)
    # Note: multi-edge counts up to 127 per (i, j) pair fit int8; fine for PPI graphs.
    return counts32.astype(jnp.int8), inv_deg


def ppi_encoder_forward(x, edge_index, params, *, mm_dtype=jnp.bfloat16):
    """Pallas-backed forward of PPIEncdoer.  Returns (mu, logstd), both [N, C] f32.

    mm_dtype controls only the MXU operand dtype of the aggregation matmul
    (adjacency counts are exact in either dtype); accumulation and the fused
    linear epilogue are always f32.
    """
    n, f = x.shape
    c = params["wl_mu"].shape[0]

    # --- fuse mu|logstd along columns; keep neighbor / root weights separate ---
    wl = jnp.concatenate([params["wl_mu"].T, params["wl_ls"].T], axis=1)  # [F, 2C]
    wr = jnp.concatenate([params["wr_mu"].T, params["wr_ls"].T], axis=1)  # [F, 2C]
    wl = wl.astype(jnp.float32)
    wr = wr.astype(jnp.float32)
    b = jnp.concatenate([params["b_mu"], params["b_ls"]]).reshape(1, 2 * c)
    b = b.astype(jnp.float32)

    adj, inv_deg = build_adj_counts(edge_index, n)

    # --- tile selection + asymmetric zero padding ------------------------------
    # Row tiles (sublanes of int8 A -> multiples of 32); >= 2 strips when N > 128
    # so v7x's two TensorCores both get work on the "parallel" axis.
    if n <= 128:
        tm = _round_up(n, 32)
    else:
        half = _round_up(-(-n // 2), 32)
        cands = [t for t in (512, 384, 256, 192, 128, 96, 64, 32) if t <= half] or [32]
        tm = _pick_tile(n, cands)
    n_rows_pad = _round_up(n, tm)

    # Contraction tiles (lanes of A -> multiples of 128).
    if n <= 2048:
        tk = _round_up(n, 128)
    else:
        tk = _pick_tile(n, (2048, 1536, 1024, 768, 512, 384, 256, 128))
    n_cols_pad = _round_up(n, tk)

    adj_p = jnp.pad(adj, ((0, n_rows_pad - n), (0, n_cols_pad - n)))
    x_k = jnp.pad(x, ((0, n_cols_pad - n), (0, 0))).astype(mm_dtype)   # contraction copy
    x_i = jnp.pad(x, ((0, n_rows_pad - n), (0, 0))).astype(jnp.float32)  # root copy (f32)
    inv_deg_p = jnp.pad(inv_deg, ((0, n_rows_pad - n), (0, 0)))

    grid = (n_rows_pad // tm, n_cols_pad // tk)

    out = pl.pallas_call(
        _sage_encoder_kernel,
        out_shape=jax.ShapeDtypeStruct((n_rows_pad, 2 * c), jnp.float32),
        grid_spec=pltpu.PrefetchScalarGridSpec(
            num_scalar_prefetch=0,
            grid=grid,
            in_specs=[
                pl.BlockSpec((tm, tk), lambda i, k: (i, k)),        # int8 count strip
                pl.BlockSpec((tk, f), lambda i, k: (k, 0)),         # x  (contraction)
                pl.BlockSpec((tm, f), lambda i, k: (i, 0)),         # x  (root rows, f32)
                pl.BlockSpec((tm, 1), lambda i, k: (i, 0)),         # 1/deg row scale
                pl.BlockSpec((f, 2 * c), lambda i, k: (0, 0)),      # W_l  [F, 2C]
                pl.BlockSpec((f, 2 * c), lambda i, k: (0, 0)),      # W_r  [F, 2C]
                pl.BlockSpec((1, 2 * c), lambda i, k: (0, 0)),      # fused bias
            ],
            out_specs=pl.BlockSpec((tm, 2 * c), lambda i, k: (i, 0)),
            scratch_shapes=[pltpu.VMEM((tm, f), jnp.float32)],      # f32 aggregation acc
        ),
        compiler_params=pltpu.CompilerParams(
            dimension_semantics=("parallel", "arbitrary"),
            vmem_limit_bytes=32 * 1024 * 1024),
    )(adj_p, x_k, x_i, inv_deg_p, wl, wr, b)

    # Padded rows (n .. n_rows_pad) hold bias-only garbage; they are sliced off here,
    # never read.
    mu = out[:n, :c]
    logstd = out[:n, c:]
    return mu, logstd


def init_params(key, in_channels, out_channels):
    """Deterministic glorot-uniform init for the two SAGEConv layers."""
    def glorot(k, shape):
        fan_in, fan_out = shape[1], shape[0]
        lim = (6.0 / (fan_in + fan_out)) ** 0.5
        return jax.random.uniform(k, shape, jnp.float32, -lim, lim)

    ks = jax.random.split(key, 4)
    return {
        "wl_mu": glorot(ks[0], (out_channels, in_channels)),
        "wr_mu": glorot(ks[1], (out_channels, in_channels)),
        "b_mu": jnp.zeros((out_channels,), jnp.float32),
        "wl_ls": glorot(ks[2], (out_channels, in_channels)),
        "wr_ls": glorot(ks[3], (out_channels, in_channels)),
        "b_ls": jnp.zeros((out_channels,), jnp.float32),
    }


def _reference(x, edge_index, params):
    n = x.shape[0]
    adj = jnp.zeros((n, n), jnp.float32).at[edge_index[1], edge_index[0]].add(1.0)
    deg = jnp.clip(jnp.sum(adj, axis=1, keepdims=True), 1.0, None)
    agg = (adj / deg) @ x
    mu = agg @ params["wl_mu"].T + x @ params["wr_mu"].T + params["b_mu"]
    ls = agg @ params["wl_ls"].T + x @ params["wr_ls"].T + params["b_ls"]
    return mu, ls


if __name__ == "__main__":
    key = jax.random.PRNGKey(0)
    k_x, k_e, k_p = jax.random.split(key, 3)

    num_nodes = 16
    in_channels = 32
    out_channels = 64          # -> fused output lane width 2C = 128 (lane-dense)
    num_edges = 48

    x = jax.random.normal(k_x, (num_nodes, in_channels), jnp.float32)
    edge_index = jax.random.randint(k_e, (2, num_edges), 0, num_nodes,
                                    dtype=jnp.int32)
    params = init_params(k_p, in_channels, out_channels)

    mu_ref, ls_ref = _reference(x, edge_index, params)

    # Default path: int8 adjacency stream, bf16 MXU operands, f32 accumulate/epilogue.
    mu, logstd = ppi_encoder_forward(x, edge_index, params)
    jax.block_until_ready((mu, logstd))
    assert mu.shape == (num_nodes, out_channels)
    assert logstd.shape == (num_nodes, out_channels)
    assert jnp.allclose(mu, mu_ref, atol=3e-2, rtol=3e-2)
    assert jnp.allclose(logstd, ls_ref, atol=3e-2, rtol=3e-2)

    # Full-precision MXU path (int8 adjacency stream still exact): tight tolerance.
    mu32, ls32 = ppi_encoder_forward(x, edge_index, params, mm_dtype=jnp.float32)
    jax.block_until_ready((mu32, ls32))
    assert jnp.allclose(mu32, mu_ref, atol=1e-4, rtol=1e-4)
    assert jnp.allclose(ls32, ls_ref, atol=1e-4, rtol=1e-4)

    print("KERNEL_OK")
</pallas_src>

<mosaic_0001>
module attributes {stable_mosaic.version = 11 : i64} {
  func.func @_sage_encoder_kernel(%arg0: i32, %arg1: i32, %arg2: memref<32x128xi8, #tpu.memory_space<vmem>>, %arg3: memref<128x32xbf16, #tpu.memory_space<vmem>>, %arg4: memref<32x32xf32, #tpu.memory_space<vmem>>, %arg5: memref<32x1xf32, #tpu.memory_space<vmem>>, %arg6: memref<32x128xf32, #tpu.memory_space<vmem>>, %arg7: memref<32x128xf32, #tpu.memory_space<vmem>>, %arg8: memref<1x128xf32, #tpu.memory_space<vmem>>, %arg9: memref<32x128xf32, #tpu.memory_space<vmem>>, %arg10: memref<32x32xf32, #tpu.memory_space<vmem>>) attributes {dimension_semantics = [#tpu.dimension_semantics<parallel>, #tpu.dimension_semantics<arbitrary>], iteration_bounds = array<i64: 1, 1>, scalar_prefetch = 0 : i64, scratch_operands = 1 : i64, tpu.core_type = #tpu.core_type<tc>, window_params = [{transform_indices = @transform_0, window_bounds = array<i64: 32, 128>}, {transform_indices = @transform_1, window_bounds = array<i64: 128, 32>}, {transform_indices = @transform_2, window_bounds = array<i64: 32, 32>}, {transform_indices = @transform_3, window_bounds = array<i64: 32, 1>}, {pipeline_mode = #tpu.pipeline_mode<synchronous>, transform_indices = @transform_4, window_bounds = array<i64: 32, 128>}, {pipeline_mode = #tpu.pipeline_mode<synchronous>, transform_indices = @transform_5, window_bounds = array<i64: 32, 128>}, {pipeline_mode = #tpu.pipeline_mode<synchronous>, transform_indices = @transform_6, window_bounds = array<i64: 1, 128>}, {transform_indices = @transform_7, window_bounds = array<i64: 32, 128>}]} {
    %c0_i32 = arith.constant 0 : i32
    %0 = arith.cmpi eq, %arg1, %c0_i32 : i32
    %1 = arith.extui %0 : i1 to i32
    %c0_i32_0 = arith.constant 0 : i32
    %2 = arith.cmpi ne, %1, %c0_i32_0 : i32
    scf.if %2 {
      %cst_10 = arith.constant 0.000000e+00 : f32
      %13 = vector.broadcast %cst_10 : f32 to vector<32x32xf32>
      %c0_11 = arith.constant 0 : index
      %c0_12 = arith.constant 0 : index
      %14 = vector.load %arg10[%c0_11, %c0_12] : memref<32x32xf32, #tpu.memory_space<vmem>>, vector<32x32xf32>
      tpu.vector_store %arg10[%c0_11, %c0_12], %13 {strides = array<i32>} : memref<32x32xf32, #tpu.memory_space<vmem>>, vector<32x32xf32>,
    } else {
    }
    %c0 = arith.constant 0 : index
    %c0_1 = arith.constant 0 : index
    %3 = vector.load %arg10[%c0, %c0_1] : memref<32x32xf32, #tpu.memory_space<vmem>>, vector<32x32xf32>
    %c0_2 = arith.constant 0 : index
    %c0_3 = arith.constant 0 : index
    %4 = vector.load %arg2[%c0_2, %c0_3] : memref<32x128xi8, #tpu.memory_space<vmem>>, vector<32x128xi8>
    %5 = arith.sitofp %4 : vector<32x128xi8> to vector<32x128xbf16>
    %c0_4 = arith.constant 0 : index
    %c0_5 = arith.constant 0 : index
    %6 = vector.load %arg3[%c0_4, %c0_5] : memref<128x32xbf16, #tpu.memory_space<vmem>>, vector<128x32xbf16>
    %cst = arith.constant dense<0.000000e+00> : vector<32x32xf32>
    %7 = tpu.matmul %5, %6, %cst {dimension_numbers = #tpu.dot_dimension_numbers<[1], [0], [0], [1], [0, 0, 1, 1], [], []>} : vector<32x128xbf16>, vector<128x32xbf16>, vector<32x32xf32> -> vector<32x32xf32>
    %8 = arith.addf %3, %7 : vector<32x32xf32>
    %c0_6 = arith.constant 0 : index
    %c0_7 = arith.constant 0 : index
    %9 = vector.load %arg10[%c0_6, %c0_7] : memref<32x32xf32, #tpu.memory_space<vmem>>, vector<32x32xf32>
    tpu.vector_store %arg10[%c0_6, %c0_7], %8 {strides = array<i32>} : memref<32x32xf32, #tpu.memory_space<vmem>>, vector<32x32xf32>,
    %c0_i32_8 = arith.constant 0 : i32
    %10 = arith.cmpi eq, %arg1, %c0_i32_8 : i32
    %11 = arith.extui %10 : i1 to i32
    %c0_i32_9 = arith.constant 0 : i32
    %12 = arith.cmpi ne, %11, %c0_i32_9 : i32
    scf.if %12 {
      %c0_10 = arith.constant 0 : index
      %c0_11 = arith.constant 0 : index
      %13 = vector.load %arg10[%c0_10, %c0_11] : memref<32x32xf32, #tpu.memory_space<vmem>>, vector<32x32xf32>
      %c0_12 = arith.constant 0 : index
      %c0_13 = arith.constant 0 : index
      %14 = vector.load %arg5[%c0_12, %c0_13] : memref<32x1xf32, #tpu.memory_space<vmem>>, vector<32x1xf32>
      %15 = vector.broadcast %14 : vector<32x1xf32> to vector<32x32xf32>
      %16 = arith.mulf %13, %15 : vector<32x32xf32>
      %c0_14 = arith.constant 0 : index
      %c0_15 = arith.constant 0 : index
      %17 = vector.load %arg6[%c0_14, %c0_15] : memref<32x128xf32, #tpu.memory_space<vmem>>, vector<32x128xf32>
      %cst_16 = arith.constant dense<0.000000e+00> : vector<32x128xf32>
      %18 = tpu.matmul %16, %17, %cst_16 {dimension_numbers = #tpu.dot_dimension_numbers<[1], [0], [0], [1], [0, 0, 1, 1], [], []>} : vector<32x32xf32>, vector<32x128xf32>, vector<32x128xf32> -> vector<32x128xf32>
      %c0_17 = arith.constant 0 : index
      %c0_18 = arith.constant 0 : index
      %19 = vector.load %arg4[%c0_17, %c0_18] : memref<32x32xf32, #tpu.memory_space<vmem>>, vector<32x32xf32>
      %c0_19 = arith.constant 0 : index
      %c0_20 = arith.constant 0 : index
      %20 = vector.load %arg7[%c0_19, %c0_20] : memref<32x128xf32, #tpu.memory_space<vmem>>, vector<32x128xf32>
      %cst_21 = arith.constant dense<0.000000e+00> : vector<32x128xf32>
      %21 = tpu.matmul %19, %20, %cst_21 {dimension_numbers = #tpu.dot_dimension_numbers<[1], [0], [0], [1], [0, 0, 1, 1], [], []>} : vector<32x32xf32>, vector<32x128xf32>, vector<32x128xf32> -> vector<32x128xf32>
      %22 = arith.addf %18, %21 : vector<32x128xf32>
      %c0_22 = arith.constant 0 : index
      %c0_23 = arith.constant 0 : index
      %23 = vector.load %arg8[%c0_22, %c0_23] : memref<1x128xf32, #tpu.memory_space<vmem>>, vector<1x128xf32>
      %24 = vector.broadcast %23 : vector<1x128xf32> to vector<32x128xf32>
      %25 = arith.addf %22, %24 : vector<32x128xf32>
      %c0_24 = arith.constant 0 : index
      %c0_25 = arith.constant 0 : index
      %26 = vector.load %arg9[%c0_24, %c0_25] : memref<32x128xf32, #tpu.memory_space<vmem>>, vector<32x128xf32>
      tpu.vector_store %arg9[%c0_24, %c0_25], %25 {strides = array<i32>} : memref<32x128xf32, #tpu.memory_space<vmem>>, vector<32x128xf32>,
    } else {
    }
    return
  }
  func.func @transform_0(%arg0: i32, %arg1: i32) -> (i32, i32) {
    %c0_i32 = arith.constant 0 : i32
    return %arg0, %arg1 : i32, i32
  }
  func.func @transform_1(%arg0: i32, %arg1: i32) -> (i32, i32) {
    %c0_i32 = arith.constant 0 : i32
    %c0_i32_0 = arith.constant 0 : i32
    return %arg1, %c0_i32 : i32, i32
  }
  func.func @transform_2(%arg0: i32, %arg1: i32) -> (i32, i32) {
    %c0_i32 = arith.constant 0 : i32
    %c0_i32_0 = arith.constant 0 : i32
    return %arg0, %c0_i32 : i32, i32
  }
  func.func @transform_3(%arg0: i32, %arg1: i32) -> (i32, i32) {
    %c0_i32 = arith.constant 0 : i32
    %c0_i32_0 = arith.constant 0 : i32
    return %arg0, %c0_i32 : i32, i32
  }
  func.func @transform_4(%arg0: i32, %arg1: i32) -> (i32, i32) {
    %c0_i32 = arith.constant 0 : i32
    %c0_i32_0 = arith.constant 0 : i32
    %c0_i32_1 = arith.constant 0 : i32
    return %c0_i32, %c0_i32_0 : i32, i32
  }
  func.func @transform_5(%arg0: i32, %arg1: i32) -> (i32, i32) {
    %c0_i32 = arith.constant 0 : i32
    %c0_i32_0 = arith.constant 0 : i32
    %c0_i32_1 = arith.constant 0 : i32
    return %c0_i32, %c0_i32_0 : i32, i32
  }
  func.func @transform_6(%arg0: i32, %arg1: i32) -> (i32, i32) {
    %c0_i32 = arith.constant 0 : i32
    %c0_i32_0 = arith.constant 0 : i32
    %c0_i32_1 = arith.constant 0 : i32
    return %c0_i32, %c0_i32_0 : i32, i32
  }
  func.func @transform_7(%arg0: i32, %arg1: i32) -> (i32, i32) {
    %c0_i32 = arith.constant 0 : i32
    %c0_i32_0 = arith.constant 0 : i32
    return %arg0, %c0_i32 : i32, i32
  }
}

</mosaic_0001>

<llo_original>
// kernel: tpu_custom_call.1
$region0: #{tpu_custom_call.1}
  #allocation0 [shape = 'u32[]', space=smem, size = 0x4, offset = 0x4, fixed_abs, tag = 'smem constant byte address 0x4 - core index']
  #allocation1 [shape = 'u32[144,128]{1,0:T(1,128)}', space=vmem, size = 0x12000, scoped, tag = 'internal scratch']
  #allocation2 [shape = 'f32[32,32]{1,0:T(8,128)}', space=vmem, size = 0x4000, scoped, tag = 'scratch operand']
  %s0 = inlined_call_operand.hbm [shape: s8[32,128], index: 0, kind: input, shape index: {}]
  %s1 = inlined_call_operand.vmem [shape: bf16[128,32], index: 1, kind: input, shape index: {}]
  %s2 = inlined_call_operand.vmem [shape: f32[32,32], index: 2, kind: input, shape index: {}]
  %s3 = inlined_call_operand.vmem [shape: f32[32,1], index: 3, kind: input, shape index: {}]
  %s4 = inlined_call_operand.vmem [shape: f32[32,128], index: 4, kind: input, shape index: {}]
  %s5 = inlined_call_operand.vmem [shape: f32[32,128], index: 5, kind: input, shape index: {}]
  %s6 = inlined_call_operand.vmem [shape: f32[1,128], index: 6, kind: input, shape index: {}]
  %s7 = inlined_call_operand.hbm [shape: f32[32,128], index: 7, kind: output, shape index: {}]
  %s8 = sld [smem:[#allocation0]]
  $region50: #{tpu_custom_call.1} parent=0
    _
  %s10 = ssub.s32 1, %s8
  %s11 = scalar_select 0, %s10, %s8
  $region1: #{tpu_custom_call.1} parent=0
    #allocation3 [shape = 'u8[4096]{0}', space=vmem, size = 0x1000, scoped, tag = 'input window, operand 0, single buffered']
    #allocation4 [shape = 's32[1]{0}', space=sflag, size = 0x4, scoped, tag = 'scoped memory for tpu_custom_call.1']
    #allocation5 [shape = 's32[1]{0}', space=sflag, size = 0x4, scoped, tag = 'scoped memory for tpu_custom_call.1']
    #allocation6 [shape = 'u8[16384]{0}', space=vmem, size = 0x4000, scoped, tag = 'output window, operand 0, single buffered']
    %12 = vsyncpa [#allocation4], 0
    %13 = vsyncpa [#allocation5], 0
    // Predicated region
    $region2: #{tpu_custom_call.1} parent=1 // pred_check
      _
    $region3: #{tpu_custom_call.1} parent=1 // pred_check_branch
      %15 = sbr.rel (0) target = $region5
    $region4: #{tpu_custom_call.1} parent=1 // pred_region
      %s17 = ssub.s32 128, 128
      %18 = vsyncadd [#allocation4], %s17
      %s20 = sshll.u32 [#allocation3], 4
      %s21 = int_to_ptr.vmem [resolvable:$true] %s20
      %23 = dma.hbm_to_vmem [thread:$0]  %s0, 128, %s21, [#allocation4]
    $region5: #{tpu_custom_call.1} parent=1 // pred_fallthru
      _
    // Predicated region
    $region6: #{tpu_custom_call.1} parent=1 // pred_check
      _
    $region7: #{tpu_custom_call.1} parent=1 // pred_check_branch
      %25 = sbr.rel (0) target = $region9
    $region8: #{tpu_custom_call.1} parent=1 // pred_region
      _
    $region9: #{tpu_custom_call.1} parent=1 // pred_fallthru
      _
    // Predicated region
    $region10: #{tpu_custom_call.1} parent=1 // pred_check
      _
    $region11: #{tpu_custom_call.1} parent=1 // pred_check_branch
      %27 = sbr.rel (0) target = $region13
    $region12: #{tpu_custom_call.1} parent=1 // pred_region
      _
    $region13: #{tpu_custom_call.1} parent=1 // pred_fallthru
      _
    // Predicated region
    $region14: #{tpu_custom_call.1} parent=1 // pred_check
      _
    $region15: #{tpu_custom_call.1} parent=1 // pred_check_branch
      %29 = sbr.rel (0) target = $region17
    $region16: #{tpu_custom_call.1} parent=1 // pred_region
      _
    $region17: #{tpu_custom_call.1} parent=1 // pred_fallthru
      _
    // Predicated region
    $region18: #{tpu_custom_call.1} parent=1 // pred_check
      _
    $region19: #{tpu_custom_call.1} parent=1 // pred_check_branch
      %31 = sbr.rel (0) target = $region21
    $region20: #{tpu_custom_call.1} parent=1 // pred_region
      _
    $region21: #{tpu_custom_call.1} parent=1 // pred_fallthru
      _
    // Predicated region
    $region22: #{tpu_custom_call.1} parent=1 // pred_check
      _
    $region23: #{tpu_custom_call.1} parent=1 // pred_check_branch
      %33 = sbr.rel (0) target = $region25
    $region24: #{tpu_custom_call.1} parent=1 // pred_region
      _
    $region25: #{tpu_custom_call.1} parent=1 // pred_fallthru
      _
    // Predicated region
    $region26: #{tpu_custom_call.1} parent=1 // pred_check
      _
    $region27: #{tpu_custom_call.1} parent=1 // pred_check_branch
      %35 = sbr.rel (0) target = $region29
    $region28: #{tpu_custom_call.1} parent=1 // pred_region
      _
    $region29: #{tpu_custom_call.1} parent=1 // pred_fallthru
      _
    // Predicated region
    $region30: #{tpu_custom_call.1} parent=1 // pred_check
      _
    $region31: #{tpu_custom_call.1} parent=1 // pred_check_branch
      %37 = sbr.rel (0) target = $region33
    $region32: #{tpu_custom_call.1} parent=1 // pred_region
      %38 = dma.done [#allocation4], 128
    $region33: #{tpu_custom_call.1} parent=1 // pred_fallthru
      _
    %p40 = scmp.eq.s32.totalorder 0, 0
    // Predicated region
    $region34: #{tpu_custom_call.1} parent=1 // pred_check
      %p41 = pneg %p40
    $region35: #{tpu_custom_call.1} parent=1 // pred_check_branch
      %43 = sbr.rel (%p41) target = $region37
    $region36: #{tpu_custom_call.1} parent=1 // pred_region
      %vm44 = vcmask 261120
      %45 = vst.msk [vmem:[#allocation2] sm:$0xff] %vm44, 0.0
      %46 = vst.msk [vmem:[#allocation2 + $0x8] sm:$0xff] %vm44, 0.0
      %47 = vst.msk [vmem:[#allocation2 + $0x10] sm:$0xff] %vm44, 0.0
      %48 = vst.msk [vmem:[#allocation2 + $0x18] sm:$0xff] %vm44, 0.0
    $region37: #{tpu_custom_call.1} parent=1 // pred_fallthru
      _
    %v49 = vld [vmem:[#allocation2] sm:$0xff]
    %v50 = vld [vmem:[#allocation2 + $0x8] sm:$0xff]
    %v51 = vld [vmem:[#allocation2 + $0x10] sm:$0xff]
    %v52 = vld [vmem:[#allocation2 + $0x18] sm:$0xff]
    %v53 = vld [vmem:[#allocation3] sm:$0xff]
    %v54 = vunpack.c.l.s8.bf16 %v53
    %v55 = vunpack.c.h.s8.bf16 %v53
    %v56 = vld [vmem:[%s1] sm:$0xf]
    %v57 = vld [vmem:[%s1 + $0x4] sm:$0xf]
    %v58 = vld [vmem:[%s1 + $0x8] sm:$0xf]
    %v59 = vld [vmem:[%s1 + $0xc] sm:$0xf]
    %v60 = vld [vmem:[%s1 + $0x10] sm:$0xf]
    %v61 = vld [vmem:[%s1 + $0x14] sm:$0xf]
    %v62 = vld [vmem:[%s1 + $0x18] sm:$0xf]
    %v63 = vld [vmem:[%s1 + $0x1c] sm:$0xf]
    %v64 = vld [vmem:[%s1 + $0x20] sm:$0xf]
    %v65 = vld [vmem:[%s1 + $0x24] sm:$0xf]
    %v66 = vld [vmem:[%s1 + $0x28] sm:$0xf]
    %v67 = vld [vmem:[%s1 + $0x2c] sm:$0xf]
    %v68 = vld [vmem:[%s1 + $0x30] sm:$0xf]
    %v69 = vld [vmem:[%s1 + $0x34] sm:$0xf]
    %v70 = vld [vmem:[%s1 + $0x38] sm:$0xf]
    %v71 = vld [vmem:[%s1 + $0x3c] sm:$0xf]
    %v88 = vunpack.c.l.b16 %v56
    %v89 = vunpack.c.l.b16 %v57
    %v90 = vunpack.c.l.b16 %v58
    %v91 = vunpack.c.l.b16 %v59
    %v92 = vunpack.c.l.b16 %v60
    %v93 = vunpack.c.l.b16 %v61
    %v94 = vunpack.c.l.b16 %v62
    %v95 = vunpack.c.l.b16 %v63
    %v96 = vunpack.c.l.b16 %v64
    %v97 = vunpack.c.l.b16 %v65
    %v98 = vunpack.c.l.b16 %v66
    %v99 = vunpack.c.l.b16 %v67
    %v100 = vunpack.c.l.b16 %v68
    %v101 = vunpack.c.l.b16 %v69
    %v102 = vunpack.c.l.b16 %v70
    %v103 = vunpack.c.l.b16 %v71
    %v104 = vpack.c.b16 %v89, %v88
    %v105 = vpack.c.b16 %v91, %v90
    %v106 = vpack.c.b16 %v93, %v92
    %v107 = vpack.c.b16 %v95, %v94
    %v108 = vpack.c.b16 %v97, %v96
    %v109 = vpack.c.b16 %v99, %v98
    %v110 = vpack.c.b16 %v101, %v100
    %v111 = vpack.c.b16 %v103, %v102
    %120 = vmatprep.subr.bf16.mxu0 0
    %121 = vmatpush1.bf16.msra.mxu0 %v104
    %122 = vmatprep.subr.bf16.mxu0 0
    %123 = vmatpush1.bf16.msra.mxu0 %v105
    %124 = vmatprep.subr.bf16.mxu0 0
    %125 = vmatpush1.bf16.msra.mxu0 %v106
    %126 = vmatprep.subr.bf16.mxu0 0
    %127 = vmatpush1.bf16.msra.mxu0 %v107
    %128 = vmatprep.subr.bf16.mxu0 0
    %129 = vmatpush1.bf16.msra.mxu0 %v108
    %130 = vmatprep.subr.bf16.mxu0 0
    %131 = vmatpush1.bf16.msra.mxu0 %v109
    %132 = vmatprep.subr.bf16.mxu0 0
    %133 = vmatpush1.bf16.msra.mxu0 %v110
    %134 = vmatprep.subr.bf16.mxu0 0
    %135 = vmatpush1.bf16.msra.mxu0 %v111
    %136 = vmatprep.subr.bf16.mxu0 0
    %137 = vmatpush1.bf16.msra.mxu0 0
    %138 = vmatprep.subr.bf16.mxu0 0
    %139 = vmatpush1.bf16.msra.mxu0 0
    %140 = vmatprep.subr.bf16.mxu0 0
    %141 = vmatpush1.bf16.msra.mxu0 0
    %142 = vmatprep.subr.bf16.mxu0 0
    %143 = vmatpush1.bf16.msra.mxu0 0
    %144 = vmatprep.subr.bf16.mxu0 0
    %145 = vmatpush1.bf16.msra.mxu0 0
    %146 = vmatprep.subr.bf16.mxu0 0
    %147 = vmatpush1.bf16.msra.mxu0 0
    %148 = vmatprep.subr.bf16.mxu0 0
    %149 = vmatpush1.bf16.msra.mxu0 0
    %150 = vmatprep.subr.bf16.mxu0 0
    %151 = vmatpush1.bf16.msra.mxu0 0
    %152 = vmatprep.mubr.bf16.mxu0 0
    %153 = vmatmul.mubr.bf16.gmra.mrb[0].mxu0 %v54
    %v154 = vpop.f32.mrb[0].mxu0
    %v155 = vadd.f32 0.0, %v154
    %v156 = vpop.f32.mrb[0].mxu0
    %v157 = vpop.f32.mrb[0].mxu0
    %v158 = vadd.f32 0.0, %v157
    %v159 = vpop.f32.mrb[0].mxu0
    %160 = vmatprep.mubr.bf16.mxu0 0
    %161 = vmatmul.mubr.bf16.gmra.mrb[0].mxu0 %v55
    %v162 = vpop.f32.mrb[0].mxu0
    %v163 = vadd.f32 0.0, %v162
    %v164 = vpop.f32.mrb[0].mxu0
    %v165 = vpop.f32.mrb[0].mxu0
    %v166 = vadd.f32 0.0, %v165
    %v167 = vpop.f32.mrb[0].mxu0
    %168 = vdwg.mxu0
    %v169 = vadd.f32 %v49, %v155
    %v170 = vadd.f32 %v50, %v158
    %v171 = vadd.f32 %v51, %v163
    %v172 = vadd.f32 %v52, %v166
    %vm173 = vcmask 261120
    %174 = vst.msk [vmem:[#allocation2] sm:$0xff] %vm173, %v169
    %175 = vst.msk [vmem:[#allocation2 + $0x8] sm:$0xff] %vm173, %v170
    %176 = vst.msk [vmem:[#allocation2 + $0x10] sm:$0xff] %vm173, %v171
    %177 = vst.msk [vmem:[#allocation2 + $0x18] sm:$0xff] %vm173, %v172
    // Predicated region
    $region38: #{tpu_custom_call.1} parent=1 // pred_check
      %p178 = pneg %p40
    $region39: #{tpu_custom_call.1} parent=1 // pred_check_branch
      %180 = sbr.rel (%p178) target = $region41
    $region40: #{tpu_custom_call.1} parent=1 // pred_region
      %v181 = vld [vmem:[#allocation2] sm:$0xff]
      %v182 = vld [vmem:[#allocation2 + $0x8] sm:$0xff]
      %v183 = vld [vmem:[#allocation2 + $0x10] sm:$0xff]
      %v184 = vld [vmem:[#allocation2 + $0x18] sm:$0xff]
      %v185 = vld [vmem:[%s3] sm:$0xff]
      %v186 = vld [vmem:[%s3 + $0x8] sm:$0xff]
      %v187 = vld [vmem:[%s3 + $0x10] sm:$0xff]
      %v188 = vld [vmem:[%s3 + $0x18] sm:$0xff]
      %190 = vset.pattern.permute.xlu0 0
      %191 = vperm.xlu0 %190, %v185
      %v192 = vpop.permute.xlu0 %191
      %195 = vset.pattern.permute.xlu0 0
      %196 = vperm.xlu0 %195, %v186
      %v197 = vpop.permute.xlu0 %196
      %200 = vset.pattern.permute.xlu0 0
      %201 = vperm.xlu0 %200, %v187
      %v202 = vpop.permute.xlu0 %201
      %205 = vset.pattern.permute.xlu0 0
      %206 = vperm.xlu0 %205, %v188
      %v207 = vpop.permute.xlu0 %206
      %v209 = vmul.f32 %v181, %v192
      %v210 = vmul.f32 %v182, %v197
      %v211 = vmul.f32 %v183, %v202
      %v212 = vmul.f32 %v184, %v207
      %v213 = vld [vmem:[%s4] sm:$0xff]
      %v214 = vld [vmem:[%s4 + $0x8] sm:$0xff]
      %v215 = vld [vmem:[%s4 + $0x10] sm:$0xff]
      %v216 = vld [vmem:[%s4 + $0x18] sm:$0xff]
      %v217 = vld [vmem:[%s2] sm:$0xff]
      %v218 = vld [vmem:[%s2 + $0x8] sm:$0xff]
      %v219 = vld [vmem:[%s2 + $0x10] sm:$0xff]
      %v220 = vld [vmem:[%s2 + $0x18] sm:$0xff]
      %v221 = vld [vmem:[%s5] sm:$0xff]
      %v222 = vld [vmem:[%s5 + $0x8] sm:$0xff]
      %v223 = vld [vmem:[%s5 + $0x10] sm:$0xff]
      %v224 = vld [vmem:[%s5 + $0x18] sm:$0xff]
      %v226 = vsel %vm173, %v217, 0
      %v229 = vsel %vm173, %v218, 0
      %v232 = vsel %vm173, %v219, 0
      %v235 = vsel %vm173, %v220, 0
      %237 = vmatprep.subr.mxu0 0.0
      %238 = vmatpush1.msra.mxu0 %v221
      %239 = vmatprep.subr.mxu0 0.0
      %240 = vmatpush1.msra.mxu0 %v222
      %241 = vmatprep.subr.mxu0 0.0
      %242 = vmatpush1.msra.mxu0 %v223
      %243 = vmatprep.subr.mxu0 0.0
      %244 = vmatpush1.msra.mxu0 %v224
      %245 = vmatprep.subr.mxu0 0.0
      %246 = vmatpush1.msra.mxu0 0.0
      %247 = vmatprep.subr.mxu0 0.0
      %248 = vmatpush1.msra.mxu0 0.0
      %249 = vmatprep.subr.mxu0 0.0
      %250 = vmatpush1.msra.mxu0 0.0
      %251 = vmatprep.subr.mxu0 0.0
      %252 = vmatpush1.msra.mxu0 0.0
      %253 = vmatprep.subr.mxu0 0.0
      %254 = vmatpush1.msra.mxu0 0.0
      %255 = vmatprep.subr.mxu0 0.0
      %256 = vmatpush1.msra.mxu0 0.0
      %257 = vmatprep.subr.mxu0 0.0
      %258 = vmatpush1.msra.mxu0 0.0
      %259 = vmatprep.subr.mxu0 0.0
      %260 = vmatpush1.msra.mxu0 0.0
      %261 = vmatprep.subr.mxu0 0.0
      %262 = vmatpush1.msra.mxu0 0.0
      %263 = vmatprep.subr.mxu0 0.0
      %264 = vmatpush1.msra.mxu0 0.0
      %265 = vmatprep.subr.mxu0 0.0
      %266 = vmatpush1.msra.mxu0 0.0
      %267 = vmatprep.subr.mxu0 0.0
      %268 = vmatpush1.msra.mxu0 0.0
      %269 = vmatprep.subr.mxu0 0.0
      %270 = vmatpush1.msra.mxu0 0.0
      %271 = vmatprep.subr.mxu0 0.0
      %272 = vmatpush1.msra.mxu0 0.0
      %273 = vmatprep.subr.mxu0 0.0
      %274 = vmatpush1.msra.mxu0 0.0
      %275 = vmatprep.subr.mxu0 0.0
      %276 = vmatpush1.msra.mxu0 0.0
      %277 = vmatprep.subr.mxu0 0.0
      %278 = vmatpush1.msra.mxu0 0.0
      %279 = vmatprep.subr.mxu0 0.0
      %280 = vmatpush1.msra.mxu0 0.0
      %281 = vmatprep.subr.mxu0 0.0
      %282 = vmatpush1.msra.mxu0 0.0
      %283 = vmatprep.subr.mxu0 0.0
      %284 = vmatpush1.msra.mxu0 0.0
      %285 = vmatprep.subr.mxu0 0.0
      %286 = vmatpush1.msra.mxu0 0.0
      %287 = vmatprep.subr.mxu0 0.0
      %288 = vmatpush1.msra.mxu0 0.0
      %289 = vmatprep.subr.mxu0 0.0
      %290 = vmatpush1.msra.mxu0 0.0
      %291 = vmatprep.subr.mxu0 0.0
      %292 = vmatpush1.msra.mxu0 0.0
      %293 = vmatprep.subr.mxu0 0.0
      %294 = vmatpush1.msra.mxu0 0.0
      %295 = vmatprep.subr.mxu0 0.0
      %296 = vmatpush1.msra.mxu0 0.0
      %297 = vmatprep.subr.mxu0 0.0
      %298 = vmatpush1.msra.mxu0 0.0
      %299 = vmatprep.subr.mxu0 0.0
      %300 = vmatpush1.msra.mxu0 0.0
      %301 = vmatprep.mubr.f32.mxu0 0.0
      %302 = vmatmul.mubr.f32.gmra.mrb[0].mxu0 %v226
      %v303 = vpop.f32.mrb[0].mxu0
      %v304 = vadd.f32 0.0, %v303
      %v305 = vpop.f32.mrb[0].mxu0
      %306 = vmatprep.mubr.f32.mxu0 0.0
      %307 = vmatmul.mubr.f32.gmra.mrb[0].mxu0 %v229
      %v308 = vpop.f32.mrb[0].mxu0
      %v309 = vadd.f32 0.0, %v308
      %v310 = vpop.f32.mrb[0].mxu0
      %311 = vmatprep.mubr.f32.mxu0 0.0
      %312 = vmatmul.mubr.f32.gmra.mrb[0].mxu0 %v232
      %v313 = vpop.f32.mrb[0].mxu0
      %v314 = vadd.f32 0.0, %v313
      %v315 = vpop.f32.mrb[0].mxu0
      %316 = vmatprep.mubr.f32.mxu0 0.0
      %317 = vmatmul.mubr.f32.gmra.mrb[0].mxu0 %v235
      %v318 = vpop.f32.mrb[0].mxu0
      %v319 = vadd.f32 0.0, %v318
      %v320 = vpop.f32.mrb[0].mxu0
      %321 = vdwg.mxu0
      %v323 = vsel %vm173, %v209, 0
      %v326 = vsel %vm173, %v210, 0
      %v329 = vsel %vm173, %v211, 0
      %v332 = vsel %vm173, %v212, 0
      %334 = vmatprep.subr.mxu0 0.0
      %335 = vmatpush1.msra.mxu0 %v213
      %336 = vmatprep.subr.mxu0 0.0
      %337 = vmatpush1.msra.mxu0 %v214
      %338 = vmatprep.subr.mxu0 0.0
      %339 = vmatpush1.msra.mxu0 %v215
      %340 = vmatprep.subr.mxu0 0.0
      %341 = vmatpush1.msra.mxu0 %v216
      %342 = vmatprep.subr.mxu0 0.0
      %343 = vmatpush1.msra.mxu0 0.0
      %344 = vmatprep.subr.mxu0 0.0
      %345 = vmatpush1.msra.mxu0 0.0
      %346 = vmatprep.subr.mxu0 0.0
      %347 = vmatpush1.msra.mxu0 0.0
      %348 = vmatprep.subr.mxu0 0.0
      %349 = vmatpush1.msra.mxu0 0.0
      %350 = vmatprep.subr.mxu0 0.0
      %351 = vmatpush1.msra.mxu0 0.0
      %352 = vmatprep.subr.mxu0 0.0
      %353 = vmatpush1.msra.mxu0 0.0
      %354 = vmatprep.subr.mxu0 0.0
      %355 = vmatpush1.msra.mxu0 0.0
      %356 = vmatprep.subr.mxu0 0.0
      %357 = vmatpush1.msra.mxu0 0.0
      %358 = vmatprep.subr.mxu0 0.0
      %359 = vmatpush1.msra.mxu0 0.0
      %360 = vmatprep.subr.mxu0 0.0
      %361 = vmatpush1.msra.mxu0 0.0
      %362 = vmatprep.subr.mxu0 0.0
      %363 = vmatpush1.msra.mxu0 0.0
      %364 = vmatprep.subr.mxu0 0.0
      %365 = vmatpush1.msra.mxu0 0.0
      %366 = vmatprep.subr.mxu0 0.0
      %367 = vmatpush1.msra.mxu0 0.0
      %368 = vmatprep.subr.mxu0 0.0
      %369 = vmatpush1.msra.mxu0 0.0
      %370 = vmatprep.subr.mxu0 0.0
      %371 = vmatpush1.msra.mxu0 0.0
      %372 = vmatprep.subr.mxu0 0.0
      %373 = vmatpush1.msra.mxu0 0.0
      %374 = vmatprep.subr.mxu0 0.0
      %375 = vmatpush1.msra.mxu0 0.0
      %376 = vmatprep.subr.mxu0 0.0
      %377 = vmatpush1.msra.mxu0 0.0
      %378 = vmatprep.subr.mxu0 0.0
      %379 = vmatpush1.msra.mxu0 0.0
      %380 = vmatprep.subr.mxu0 0.0
      %381 = vmatpush1.msra.mxu0 0.0
      %382 = vmatprep.subr.mxu0 0.0
      %383 = vmatpush1.msra.mxu0 0.0
      %384 = vmatprep.subr.mxu0 0.0
      %385 = vmatpush1.msra.mxu0 0.0
      %386 = vmatprep.subr.mxu0 0.0
      %387 = vmatpush1.msra.mxu0 0.0
      %388 = vmatprep.subr.mxu0 0.0
      %389 = vmatpush1.msra.mxu0 0.0
      %390 = vmatprep.subr.mxu0 0.0
      %391 = vmatpush1.msra.mxu0 0.0
      %392 = vmatprep.subr.mxu0 0.0
      %393 = vmatpush1.msra.mxu0 0.0
      %394 = vmatprep.subr.mxu0 0.0
      %395 = vmatpush1.msra.mxu0 0.0
      %396 = vmatprep.subr.mxu0 0.0
      %397 = vmatpush1.msra.mxu0 0.0
      %398 = vmatprep.mubr.f32.mxu0 0.0
      %399 = vmatmul.mubr.f32.gmra.mrb[0].mxu0 %v323
      %v400 = vpop.f32.mrb[0].mxu0
      %v401 = vadd.f32 %v304, %v400
      %v402 = vpop.f32.mrb[0].mxu0
      %403 = vmatprep.mubr.f32.mxu0 0.0
      %404 = vmatmul.mubr.f32.gmra.mrb[0].mxu0 %v326
      %v405 = vpop.f32.mrb[0].mxu0
      %v406 = vadd.f32 %v309, %v405
      %v407 = vpop.f32.mrb[0].mxu0
      %408 = vmatprep.mubr.f32.mxu0 0.0
      %409 = vmatmul.mubr.f32.gmra.mrb[0].mxu0 %v329
      %v410 = vpop.f32.mrb[0].mxu0
      %v411 = vadd.f32 %v314, %v410
      %v412 = vpop.f32.mrb[0].mxu0
      %413 = vmatprep.mubr.f32.mxu0 0.0
      %414 = vmatmul.mubr.f32.gmra.mrb[0].mxu0 %v332
      %v415 = vpop.f32.mrb[0].mxu0
      %v416 = vadd.f32 %v319, %v415
      %v417 = vpop.f32.mrb[0].mxu0
      %418 = vdwg.mxu0
      %v419 = vld [vmem:[%s6] sm:$0x1]
      %v421 = vlaneseq
      %v422 = vshrl.u32 %v421, 7
      %v423 = vsub.s32 0, %v422
      %v424 = vrot.slane %v419, %v423
      %v426 = vadd.f32 %v401, %v424
      %v427 = vadd.f32 %v406, %v424
      %v428 = vadd.f32 %v411, %v424
      %v429 = vadd.f32 %v416, %v424
      %430 = vst [vmem:[#allocation6] sm:$0xff] %v426
      %431 = vst [vmem:[#allocation6 + $0x8] sm:$0xff] %v427
      %432 = vst [vmem:[#allocation6 + $0x10] sm:$0xff] %v428
      %433 = vst [vmem:[#allocation6 + $0x18] sm:$0xff] %v429
    $region41: #{tpu_custom_call.1} parent=1 // pred_fallthru
      _
    // Predicated region
    $region42: #{tpu_custom_call.1} parent=1 // pred_check
      _
    $region43: #{tpu_custom_call.1} parent=1 // pred_check_branch
      %435 = sbr.rel (0) target = $region45
    $region44: #{tpu_custom_call.1} parent=1 // pred_region
      %s437 = ssub.s32 512, 512
      %438 = vsyncadd [#allocation5], %s437
      %s439 = sshll.u32 [#allocation6], 4
      %s440 = int_to_ptr.vmem [resolvable:$true] %s439
      %445 = dma.vmem_to_hbm [thread:$0]  %s440, 512, %s7, [#allocation5], 128, 128, 8
    $region45: #{tpu_custom_call.1} parent=1 // pred_fallthru
      _
    // Predicated region
    $region46: #{tpu_custom_call.1} parent=1 // pred_check
      _
    $region47: #{tpu_custom_call.1} parent=1 // pred_check_branch
      %447 = sbr.rel (0) target = $region49
    $region48: #{tpu_custom_call.1} parent=1 // pred_region
      %448 = dma.done [#allocation5], 512
    $region49: #{tpu_custom_call.1} parent=1 // pred_fallthru
      _
    %449 = vsyncpa [#allocation4], 1
    %450 = vsyncpa [#allocation5], 1

</llo_original>
